<compile_context>
chip_gen: v5e
topology: v5e:2x2
jax: 0.10.0
libtpu: 0.0.40
codegen_flags: <defaults>
</compile_context>

<pallas_src>
import functools
import math

import jax
import jax.numpy as jnp
from jax.experimental import pallas as pl
from jax.experimental.pallas import tpu as pltpu


def _reorg_kernel(x_ref, p_ref, o_ref, *, exact_split: bool):
    # x_ref: (1, rows, s*W)        rows = tile of the fused (C*Hs) dim
    # p_ref: (W, W)                constant bf16 0/1 lane de-interleave matrix
    # o_ref: (1, s, s, rows, Ws)   offset-major output view
    s = o_ref.shape[1]
    ws_n = o_ref.shape[4]
    w_n = s * ws_n                                    # = W

    p = p_ref[...]                                    # (W, W) bf16

    for i in range(s):                                # s is tiny (2): static loop
        x_i = x_ref[0, :, i * w_n:(i + 1) * w_n]      # (rows, W), contiguous lanes
        if exact_split:
            # Exact 3-way bf16 split: hi + mid + lo == x bit-exactly for finite
            # normal f32, so permuting each part with the 0/1 matrix on the
            # bf16 MXU (f32 accumulation) reproduces x exactly.
            xf = x_i.astype(jnp.float32)
            hi = xf.astype(jnp.bfloat16)
            r1 = xf - hi.astype(jnp.float32)
            mid = r1.astype(jnp.bfloat16)
            lo = (r1 - mid.astype(jnp.float32)).astype(jnp.bfloat16)
            y = (jnp.dot(hi, p, preferred_element_type=jnp.float32)
                 + jnp.dot(mid, p, preferred_element_type=jnp.float32)
                 + jnp.dot(lo, p, preferred_element_type=jnp.float32))
        else:
            # bf16 fast path: a single matmul; bf16 values pass through a 0/1
            # bf16 matrix with f32 accumulation exactly.
            y = jnp.dot(x_i, p, preferred_element_type=jnp.float32)

        # Columns of y are grouped by sub-pixel offset j; each group is a
        # contiguous Ws-wide lane block -> plain static slices + stores.
        for j in range(s):
            o_ref[0, i, j] = y[:, j * ws_n:(j + 1) * ws_n].astype(o_ref.dtype)


def _round_up(v, m):
    return -(-v // m) * m


def _vmem_budget_and_limit():
    """Per-generation VMEM budget for resident blocks and the scoped limit."""
    try:
        cap = int(pltpu.get_tpu_info().vmem_capacity_bytes)
    except Exception:
        cap = 64 * 1024 * 1024                  # conservative (v7x-sized) fallback
    budget = min(int(cap * 0.4), 28 * 1024 * 1024)   # blocks+perm+temps target
    limit = min(int(cap * 0.75), 96 * 1024 * 1024)   # scoped VMEM limit
    return budget, limit


def _pick_tile_r(R, W, s, itemsize, batch, budget, exact_split):
    """Largest divisor of R (= C*Hs) that keeps the row tile a multiple of 8
    (or the full dim), fits the *full* VMEM footprint (double-buffered in/out
    blocks + perm buffers + in-kernel temporaries) in `budget`, and — when
    possible — leaves >= 4 grid steps for megacore sharding + pipelining."""
    ws_n = W // s
    in_lanes = _round_up(s * W, 128)
    out_lanes = _round_up(ws_n, 128)
    tmp_lanes = _round_up(W, 128)
    perm_bytes = 2 * _round_up(W, 8) * _round_up(W, 128) * 2       # bf16, 2 bufs
    tmp_bpe = 16 if exact_split else 8     # f32 copy + 3x bf16 + f32 y (w/ margin)

    def footprint(tr):
        rows_pad = _round_up(tr, 8)
        in_b = 2 * rows_pad * in_lanes * itemsize
        out_b = 2 * s * s * rows_pad * out_lanes * itemsize
        tmp_b = rows_pad * tmp_lanes * tmp_bpe
        return perm_bytes + in_b + out_b + tmp_b

    divs = set()
    for k in range(1, math.isqrt(R) + 1):
        if R % k == 0:
            divs.add(k)
            divs.add(R // k)
    valid = sorted(d for d in divs if d % 8 == 0 or d == R)
    fitting = [d for d in valid if footprint(d) <= budget]
    if not fitting:
        # TODO(synk): extreme shapes (tiny C, huge H*W) may still exceed the
        #             scoped limit; would need an extra lane-chunk grid axis.
        return min(valid)
    preferred = [d for d in fitting if batch * (R // d) >= 4]
    return max(preferred) if preferred else max(fitting)


@functools.partial(jax.jit, static_argnames=("stride",))
def reorg_forward(x, *, stride=2):
    """ReorgLayer.forward for NCHW x: (B, C, H, W) -> (B, s*s*C, H//s, W//s)."""
    B, C, H, W = x.shape
    s = int(stride)
    if H % s or W % s:
        raise ValueError("H and W must be divisible by the reorg stride")
    Hs, Ws = H // s, W // s
    R = C * Hs
    sW = s * W

    # Free (metadata-only) view: x_r[b, c*Hs + hs, i*W + w] == x[b, c, hs*s+i, w]
    x_r = x.reshape(B, R, sW)

    # Per-offset (W x W) de-interleave: output column j*Ws + ws <- input lane ws*s + j.
    u = jnp.arange(W)
    col = (u % s) * Ws + (u // s)
    perm = (col[:, None] == jnp.arange(W)[None, :]).astype(jnp.bfloat16)

    exact_split = x.dtype != jnp.bfloat16
    budget, vmem_limit = _vmem_budget_and_limit()
    tile_r = _pick_tile_r(R, W, s, x.dtype.itemsize, B, budget, exact_split)
    grid = (B, R // tile_r)

    kernel = functools.partial(_reorg_kernel, exact_split=exact_split)

    cost = pl.CostEstimate(
        flops=0, transcendentals=0,
        bytes_accessed=int(2 * x.size * x.dtype.itemsize
                           + perm.size * perm.dtype.itemsize))

    out6 = pl.pallas_call(
        kernel,
        out_shape=jax.ShapeDtypeStruct((B, s, s, R, Ws), x.dtype),
        grid=grid,
        in_specs=[
            pl.BlockSpec((1, tile_r, sW), lambda b, ri: (b, ri, 0)),
            pl.BlockSpec((W, W), lambda b, ri: (0, 0)),
        ],
        out_specs=pl.BlockSpec((1, s, s, tile_r, Ws),
                               lambda b, ri: (b, 0, 0, ri, 0)),
        compiler_params=pltpu.CompilerParams(
            dimension_semantics=("parallel", "parallel"),
            vmem_limit_bytes=int(vmem_limit)),
        cost_estimate=cost,
    )(x_r, perm)

    # Free merge back to PyTorch's layout: channel index = (i*s + j)*C + c.
    return out6.reshape(B, s * s * C, Hs, Ws)


def _reorg_reference(x, stride):
    """Pure-JAX reference reproducing the PyTorch view/transpose chain exactly."""
    B, C, H, W = x.shape
    s = stride
    Hs, Ws = H // s, W // s
    x6 = x.reshape(B, C, Hs, s, Ws, s)
    x6 = jnp.transpose(x6, (0, 3, 5, 1, 2, 4))        # (B, s, s, C, Hs, Ws)
    return x6.reshape(B, s * s * C, Hs, Ws)


if __name__ == "__main__":
    key = jax.random.PRNGKey(0)
    x = jax.random.normal(key, (2, 4, 16, 16), dtype=jnp.float32)

    # f32 path (exact 3-way split).
    out = reorg_forward(x, stride=2)
    jax.block_until_ready(out)
    assert out.shape == (2, 2 * 2 * 4, 8, 8), out.shape
    ref = _reorg_reference(x, 2)
    assert jnp.allclose(out, ref, atol=1e-6, rtol=1e-6), "f32 reorg mismatch"

    # bf16 fast path (single matmul per offset) -- pure data movement, bit-exact.
    xb = x.astype(jnp.bfloat16)
    outb = reorg_forward(xb, stride=2)
    jax.block_until_ready(outb)
    refb = _reorg_reference(xb, 2)
    assert jnp.array_equal(outb, refb), "bf16 reorg mismatch"

    print("KERNEL_OK")
</pallas_src>

<mosaic_0001>
module attributes {stable_mosaic.version = 11 : i64} {
  func.func @_reorg_kernel(%arg0: i32, %arg1: i32, %arg2: memref<1x16x32xf32, #tpu.memory_space<vmem>>, %arg3: memref<16x16xbf16, #tpu.memory_space<vmem>>, %arg4: memref<1x2x2x16x8xf32, #tpu.memory_space<vmem>>) attributes {dimension_semantics = [#tpu.dimension_semantics<parallel>, #tpu.dimension_semantics<parallel>], iteration_bounds = array<i64: 2, 2>, scalar_prefetch = 0 : i64, scratch_operands = 0 : i64, tpu.core_type = #tpu.core_type<tc>, window_params = [{transform_indices = @transform_0, window_bounds = array<i64: 1, 16, 32>}, {pipeline_mode = #tpu.pipeline_mode<synchronous>, transform_indices = @transform_1, window_bounds = array<i64: 16, 16>}, {transform_indices = @transform_2, window_bounds = array<i64: 1, 2, 2, 16, 8>}]} {
    %c0 = arith.constant 0 : index
    %c0_0 = arith.constant 0 : index
    %0 = vector.load %arg3[%c0, %c0_0] : memref<16x16xbf16, #tpu.memory_space<vmem>>, vector<16x16xbf16>
    %c0_1 = arith.constant 0 : index
    %c0_2 = arith.constant 0 : index
    %c0_3 = arith.constant 0 : index
    %1 = vector.load %arg2[%c0_1, %c0_2, %c0_3] : memref<1x16x32xf32, #tpu.memory_space<vmem>>, vector<1x16x16xf32>
    %2 = vector.shape_cast %1 : vector<1x16x16xf32> to vector<16x16xf32>
    %3 = arith.truncf %2 : vector<16x16xf32> to vector<16x16xbf16>
    %4 = arith.extf %3 : vector<16x16xbf16> to vector<16x16xf32>
    %5 = arith.subf %2, %4 : vector<16x16xf32>
    %6 = arith.truncf %5 : vector<16x16xf32> to vector<16x16xbf16>
    %7 = arith.extf %6 : vector<16x16xbf16> to vector<16x16xf32>
    %8 = arith.subf %5, %7 : vector<16x16xf32>
    %9 = arith.truncf %8 : vector<16x16xf32> to vector<16x16xbf16>
    %cst = arith.constant dense<0.000000e+00> : vector<16x16xf32>
    %10 = tpu.matmul %3, %0, %cst {dimension_numbers = #tpu.dot_dimension_numbers<[1], [0], [0], [1], [0, 0, 1, 1], [], []>} : vector<16x16xbf16>, vector<16x16xbf16>, vector<16x16xf32> -> vector<16x16xf32>
    %cst_4 = arith.constant dense<0.000000e+00> : vector<16x16xf32>
    %11 = tpu.matmul %6, %0, %cst_4 {dimension_numbers = #tpu.dot_dimension_numbers<[1], [0], [0], [1], [0, 0, 1, 1], [], []>} : vector<16x16xbf16>, vector<16x16xbf16>, vector<16x16xf32> -> vector<16x16xf32>
    %12 = arith.addf %10, %11 : vector<16x16xf32>
    %cst_5 = arith.constant dense<0.000000e+00> : vector<16x16xf32>
    %13 = tpu.matmul %9, %0, %cst_5 {dimension_numbers = #tpu.dot_dimension_numbers<[1], [0], [0], [1], [0, 0, 1, 1], [], []>} : vector<16x16xbf16>, vector<16x16xbf16>, vector<16x16xf32> -> vector<16x16xf32>
    %14 = arith.addf %12, %13 : vector<16x16xf32>
    %15 = vector.extract_strided_slice %14 {offsets = [0, 0], sizes = [16, 8], strides = [1, 1]} : vector<16x16xf32> to vector<16x8xf32>
    %c0_6 = arith.constant 0 : index
    %c0_7 = arith.constant 0 : index
    %c0_8 = arith.constant 0 : index
    %c0_9 = arith.constant 0 : index
    %c0_10 = arith.constant 0 : index
    %16 = vector.load %arg4[%c0_6, %c0_7, %c0_8, %c0_9, %c0_10] : memref<1x2x2x16x8xf32, #tpu.memory_space<vmem>>, vector<1x1x1x16x8xf32>
    %17 = vector.shape_cast %16 : vector<1x1x1x16x8xf32> to vector<16x8xf32>
    %18 = vector.shape_cast %15 : vector<16x8xf32> to vector<1x1x1x16x8xf32>
    tpu.vector_store %arg4[%c0_6, %c0_7, %c0_8, %c0_9, %c0_10], %18 {strides = array<i32>} : memref<1x2x2x16x8xf32, #tpu.memory_space<vmem>>, vector<1x1x1x16x8xf32>,
    %19 = vector.extract_strided_slice %14 {offsets = [0, 8], sizes = [16, 8], strides = [1, 1]} : vector<16x16xf32> to vector<16x8xf32>
    %c0_11 = arith.constant 0 : index
    %c0_12 = arith.constant 0 : index
    %c1 = arith.constant 1 : index
    %c0_13 = arith.constant 0 : index
    %c0_14 = arith.constant 0 : index
    %20 = vector.load %arg4[%c0_11, %c0_12, %c1, %c0_13, %c0_14] : memref<1x2x2x16x8xf32, #tpu.memory_space<vmem>>, vector<1x1x1x16x8xf32>
    %21 = vector.shape_cast %20 : vector<1x1x1x16x8xf32> to vector<16x8xf32>
    %22 = vector.shape_cast %19 : vector<16x8xf32> to vector<1x1x1x16x8xf32>
    tpu.vector_store %arg4[%c0_11, %c0_12, %c1, %c0_13, %c0_14], %22 {strides = array<i32>} : memref<1x2x2x16x8xf32, #tpu.memory_space<vmem>>, vector<1x1x1x16x8xf32>,
    %c0_15 = arith.constant 0 : index
    %c0_16 = arith.constant 0 : index
    %c16 = arith.constant 16 : index
    %23 = vector.load %arg2[%c0_15, %c0_16, %c16] : memref<1x16x32xf32, #tpu.memory_space<vmem>>, vector<1x16x16xf32>
    %24 = vector.shape_cast %23 : vector<1x16x16xf32> to vector<16x16xf32>
    %25 = arith.truncf %24 : vector<16x16xf32> to vector<16x16xbf16>
    %26 = arith.extf %25 : vector<16x16xbf16> to vector<16x16xf32>
    %27 = arith.subf %24, %26 : vector<16x16xf32>
    %28 = arith.truncf %27 : vector<16x16xf32> to vector<16x16xbf16>
    %29 = arith.extf %28 : vector<16x16xbf16> to vector<16x16xf32>
    %30 = arith.subf %27, %29 : vector<16x16xf32>
    %31 = arith.truncf %30 : vector<16x16xf32> to vector<16x16xbf16>
    %cst_17 = arith.constant dense<0.000000e+00> : vector<16x16xf32>
    %32 = tpu.matmul %25, %0, %cst_17 {dimension_numbers = #tpu.dot_dimension_numbers<[1], [0], [0], [1], [0, 0, 1, 1], [], []>} : vector<16x16xbf16>, vector<16x16xbf16>, vector<16x16xf32> -> vector<16x16xf32>
    %cst_18 = arith.constant dense<0.000000e+00> : vector<16x16xf32>
    %33 = tpu.matmul %28, %0, %cst_18 {dimension_numbers = #tpu.dot_dimension_numbers<[1], [0], [0], [1], [0, 0, 1, 1], [], []>} : vector<16x16xbf16>, vector<16x16xbf16>, vector<16x16xf32> -> vector<16x16xf32>
    %34 = arith.addf %32, %33 : vector<16x16xf32>
    %cst_19 = arith.constant dense<0.000000e+00> : vector<16x16xf32>
    %35 = tpu.matmul %31, %0, %cst_19 {dimension_numbers = #tpu.dot_dimension_numbers<[1], [0], [0], [1], [0, 0, 1, 1], [], []>} : vector<16x16xbf16>, vector<16x16xbf16>, vector<16x16xf32> -> vector<16x16xf32>
    %36 = arith.addf %34, %35 : vector<16x16xf32>
    %37 = vector.extract_strided_slice %36 {offsets = [0, 0], sizes = [16, 8], strides = [1, 1]} : vector<16x16xf32> to vector<16x8xf32>
    %c0_20 = arith.constant 0 : index
    %c1_21 = arith.constant 1 : index
    %c0_22 = arith.constant 0 : index
    %c0_23 = arith.constant 0 : index
    %c0_24 = arith.constant 0 : index
    %38 = vector.load %arg4[%c0_20, %c1_21, %c0_22, %c0_23, %c0_24] : memref<1x2x2x16x8xf32, #tpu.memory_space<vmem>>, vector<1x1x1x16x8xf32>
    %39 = vector.shape_cast %38 : vector<1x1x1x16x8xf32> to vector<16x8xf32>
    %40 = vector.shape_cast %37 : vector<16x8xf32> to vector<1x1x1x16x8xf32>
    tpu.vector_store %arg4[%c0_20, %c1_21, %c0_22, %c0_23, %c0_24], %40 {strides = array<i32>} : memref<1x2x2x16x8xf32, #tpu.memory_space<vmem>>, vector<1x1x1x16x8xf32>,
    %41 = vector.extract_strided_slice %36 {offsets = [0, 8], sizes = [16, 8], strides = [1, 1]} : vector<16x16xf32> to vector<16x8xf32>
    %c0_25 = arith.constant 0 : index
    %c1_26 = arith.constant 1 : index
    %c1_27 = arith.constant 1 : index
    %c0_28 = arith.constant 0 : index
    %c0_29 = arith.constant 0 : index
    %42 = vector.load %arg4[%c0_25, %c1_26, %c1_27, %c0_28, %c0_29] : memref<1x2x2x16x8xf32, #tpu.memory_space<vmem>>, vector<1x1x1x16x8xf32>
    %43 = vector.shape_cast %42 : vector<1x1x1x16x8xf32> to vector<16x8xf32>
    %44 = vector.shape_cast %41 : vector<16x8xf32> to vector<1x1x1x16x8xf32>
    tpu.vector_store %arg4[%c0_25, %c1_26, %c1_27, %c0_28, %c0_29], %44 {strides = array<i32>} : memref<1x2x2x16x8xf32, #tpu.memory_space<vmem>>, vector<1x1x1x16x8xf32>,
    return
  }
  func.func @transform_0(%arg0: i32, %arg1: i32) -> (i32, i32, i32) {
    %c0_i32 = arith.constant 0 : i32
    %c0_i32_0 = arith.constant 0 : i32
    return %arg0, %arg1, %c0_i32 : i32, i32, i32
  }
  func.func @transform_1(%arg0: i32, %arg1: i32) -> (i32, i32) {
    %c0_i32 = arith.constant 0 : i32
    %c0_i32_0 = arith.constant 0 : i32
    %c0_i32_1 = arith.constant 0 : i32
    return %c0_i32, %c0_i32_0 : i32, i32
  }
  func.func @transform_2(%arg0: i32, %arg1: i32) -> (i32, i32, i32, i32, i32) {
    %c0_i32 = arith.constant 0 : i32
    %c0_i32_0 = arith.constant 0 : i32
    %c0_i32_1 = arith.constant 0 : i32
    %c0_i32_2 = arith.constant 0 : i32
    return %arg0, %c0_i32, %c0_i32_0, %arg1, %c0_i32_1 : i32, i32, i32, i32, i32
  }
}

</mosaic_0001>

<llo_original>
// kernel: reorg_forward.1
$region0: #{reorg_forward.1}
  #allocation0 [shape = 'u32[]', space=smem, size = 0x4, offset = 0x4, fixed_abs, tag = 'smem constant byte address 0x4 - core index']
  #allocation1 [shape = 'u32[72,128]{1,0:T(1,128)}', space=vmem, size = 0x9000, scoped, tag = 'internal scratch']
  %s0 = inlined_call_operand.vmem [shape: f32[2,32,32], index: 0, kind: input, shape index: {}]
  %s1 = inlined_call_operand.vmem [shape: bf16[16,16], index: 1, kind: input, shape index: {}]
  %s2 = inlined_call_operand.vmem [shape: f32[2,2,2,32,8], index: 2, kind: output, shape index: {}]
  %s3 = sld [smem:[#allocation0]]
  $region75: #{reorg_forward.1} parent=0
    _
  %s5 = ssub.s32 1, %s3
  %s6 = scalar_select 0, %s5, %s3
  $region1: #{reorg_forward.1} parent=0
    #allocation2 [shape = 'u8[65536]{0}', space=vmem, size = 0x10000, scoped, tag = 'output window, operand 0']
    loop: start=0, step=1, limit=6
    $region2: #{reorg_forward.1} parent=1 // loop_pre_header
      _
    $region3: #{reorg_forward.1} parent=1 // loop_header
      %s8 = sphi 0, %s12
      %p9 = scmp.ge.s32.totalorder %s8, 6
      %s15 = sphi 0, %s27
      %s16 = sphi 0, %s23
      %s17 = sphi 0, %s15
      %s18 = sphi 0, %s16
      %s19 = sphi 0, %s17
      %s20 = sphi 0, %s18
      %s32 = sphi 0, %s34
      %s35 = sphi 0, %s32
      %s36 = sphi 0, %s35
      %s52 = sphi 0, %s36
      %s56 = sphi 0, %s56
      %s58 = sphi 0, %s56
      %s59 = sphi 0, %s58
      %s73 = sphi 0, %s59
      %s81 = sphi 0, %s83
      %s84 = sphi 0, %s81
      %s85 = sphi 0, %s84
      %s101 = sphi 0, %s85
    $region4: #{reorg_forward.1} parent=1 // loop_header_branch
      %11 = sbr.rel (%p9) target = $region8
    $region5: #{reorg_forward.1} parent=1 // loop_body
      %s13 = ssub.s32 %s8, 1
      %s14 = ssub.s32 %s8, 2
      %s21 = sadd.s32 1, %s16
      %p22 = scmp.ge.s32.totalorder %s21, 2
      %s23 = scalar_select %p22, 0, %s21
      %s24 = sadd.s32 1, %s15
      %s25 = scalar_select %p22, %s24, %s15
      %p26 = scmp.ge.s32.totalorder %s25, 2
      %s27 = scalar_select %p26, 0, %s25
      %s28 = ssub.s32 %s15, %s27
      %s29 = ssub.s32 %s16, %s23
      %s30 = sor.u32 %s28, %s29
      %p31 = scmp.eq.s32.totalorder %s30, 0
      %s33 = sadd.s32 %s32, 1
      %s34 = scalar_select %p31, %s32, %s33
      %p37 = pneg %p31
      %p38 = scmp.eq.s32.totalorder %s8, 3
      %p39 = por %p37, %p38
      %p40 = scmp.ne.s32.totalorder %s32, %s35
      %p41 = scmp.eq.s32.totalorder %s8, 0
      %p42 = por %p40, %p41
      %p43 = scmp.ne.s32.totalorder %s32, %s35
      %p44 = scmp.eq.s32.totalorder %s13, 3
      %p45 = por %p43, %p44
      %p46 = scmp.ne.s32.totalorder %s35, %s36
      %p47 = scmp.eq.s32.totalorder %s13, 0
      %p48 = por %p46, %p47
      %p49 = scmp.ne.s32.totalorder %s35, %s36
      %p50 = scmp.eq.s32.totalorder %s14, 3
      %p51 = por %p49, %p50
      %p53 = scmp.ne.s32.totalorder %s36, %s52
      %p54 = scmp.eq.s32.totalorder %s14, 0
      %p55 = por %p53, %p54
      %s57 = sadd.s32 %s56, 1
      %p60 = scmp.eq.s32.totalorder %s8, 3
      %p61 = scmp.ne.s32.totalorder %s56, %s58
      %p62 = scmp.eq.s32.totalorder %s8, 0
      %p63 = por %p61, %p62
      %p64 = scmp.ne.s32.totalorder %s56, %s58
      %p65 = scmp.eq.s32.totalorder %s13, 3
      %p66 = por %p64, %p65
      %p67 = scmp.ne.s32.totalorder %s58, %s59
      %p68 = scmp.eq.s32.totalorder %s13, 0
      %p69 = por %p67, %p68
      %p70 = scmp.ne.s32.totalorder %s58, %s59
      %p71 = scmp.eq.s32.totalorder %s14, 3
      %p72 = por %p70, %p71
      %p74 = scmp.ne.s32.totalorder %s59, %s73
      %p75 = scmp.eq.s32.totalorder %s14, 0
      %p76 = por %p74, %p75
      %s77 = ssub.s32 %s15, %s27
      %s78 = ssub.s32 %s16, %s23
      %s79 = sor.u32 %s77, %s78
      %p80 = scmp.eq.s32.totalorder %s79, 0
      %s82 = sadd.s32 %s81, 1
      %s83 = scalar_select %p80, %s81, %s82
      %p86 = pneg %p80
      %p87 = scmp.eq.s32.totalorder %s8, 3
      %p88 = por %p86, %p87
      %p89 = scmp.ne.s32.totalorder %s81, %s84
      %p90 = scmp.eq.s32.totalorder %s8, 0
      %p91 = por %p89, %p90
      %p92 = scmp.ne.s32.totalorder %s81, %s84
      %p93 = scmp.eq.s32.totalorder %s13, 3
      %p94 = por %p92, %p93
      %p95 = scmp.ne.s32.totalorder %s84, %s85
      %p96 = scmp.eq.s32.totalorder %s13, 0
      %p97 = por %p95, %p96
      %p98 = scmp.ne.s32.totalorder %s84, %s85
      %p99 = scmp.eq.s32.totalorder %s14, 3
      %p100 = por %p98, %p99
      %p102 = scmp.ne.s32.totalorder %s85, %s101
      %p103 = scmp.eq.s32.totalorder %s14, 0
      %p104 = por %p102, %p103
      %p105 = scmp.le.s32.totalorder 1, %s8
      %p106 = scmp.lt.s32.totalorder %s8, 5
      %p107 = pnand %p105, %p106
      %p108 = pneg %p107
      // Predicated region
      $region9: #{reorg_forward.1} parent=5 // pred_check
        _
      $region10: #{reorg_forward.1} parent=5 // pred_check_branch
        %110 = sbr.rel (%p107) target = $region12
      $region11: #{reorg_forward.1} parent=5 // pred_region
        %s111 = ssub.s32 %s8, 1
        // Predicated region
        $region13: #{reorg_forward.1} parent=11 // pred_check
          %p112 = pneg %p69
        $region14: #{reorg_forward.1} parent=11 // pred_check_branch
          %114 = sbr.rel (%p112) target = $region16
        $region15: #{reorg_forward.1} parent=11 // pred_region
          _
        $region16: #{reorg_forward.1} parent=11 // pred_fallthru
          _
      $region12: #{reorg_forward.1} parent=5 // pred_fallthru
        _
      %p115 = scmp.lt.s32.totalorder %s8, 4
      // Predicated region
      $region17: #{reorg_forward.1} parent=5 // pred_check
        %p116 = pneg %p115
      $region18: #{reorg_forward.1} parent=5 // pred_check_branch
        %118 = sbr.rel (%p116) target = $region20
      $region19: #{reorg_forward.1} parent=5 // pred_region
        // Predicated region
        $region21: #{reorg_forward.1} parent=19 // pred_check
          %p119 = pneg %p42
        $region22: #{reorg_forward.1} parent=19 // pred_check_branch
          %121 = sbr.rel (%p119) target = $region24
        $region23: #{reorg_forward.1} parent=19 // pred_region
          %s122 = smul.u32 2, %s16
          %p123 = scmp.lt.s32.totalorder %s15, 1
          %s124 = scalar_select %p123, %s15, 1
          %p125 = scmp.lt.s32.totalorder %s122, 3
          %s126 = scalar_select %p125, %s122, 3
          %s127 = smul.addr %s124, 4
          %s128 = sadd.s32 %s126, %s127
          %s129 = smul.addr %s128, 8
          %s130 = scalar_lea.vmem %s0, %s129
          %s131 = smul.u32 2, %s16
        $region24: #{reorg_forward.1} parent=19 // pred_fallthru
          _
      $region20: #{reorg_forward.1} parent=5 // pred_fallthru
        _
      %p132 = scmp.le.s32.totalorder 1, %s8
      %p133 = scmp.lt.s32.totalorder %s8, 5
      %p134 = pnand %p132, %p133
      %p135 = pneg %p134
      // Predicated region
      $region25: #{reorg_forward.1} parent=5 // pred_check
        _
      $region26: #{reorg_forward.1} parent=5 // pred_check_branch
        %137 = sbr.rel (%p134) target = $region28
      $region27: #{reorg_forward.1} parent=5 // pred_region
        %s138 = ssub.s32 %s8, 1
        %s139 = smul.u32 2, %s18
        %p140 = scmp.lt.s32.totalorder %s17, 1
        %s141 = scalar_select %p140, %s17, 1
        %p142 = scmp.lt.s32.totalorder %s139, 3
        %s143 = scalar_select %p142, %s139, 3
        %s144 = smul.addr %s141, 4
        %s145 = sadd.s32 %s143, %s144
        %s146 = smul.addr %s145, 8
        %s147 = scalar_lea.vmem %s0, %s146
        %p148 = pneg %p48
        %p149 = pneg %p45
        %p150 = pneg %p69
        %p151 = pneg %p66
        %p152 = pneg %p97
        %p153 = pneg %p94
        %s154 = sand.u32 %s84, 1
        %s155 = sand.u32 %s84, 1
        %s156 = smul.addr %s155, 64
        %s157 = scalar_lea.vmem [#allocation2], %s156
        %s158 = smul.u32 2, %s18
        %p159 = scmp.lt.s32.totalorder %s17, 1
        %s160 = scalar_select %p159, %s17, 1
        %p161 = scmp.lt.s32.totalorder %s158, 3
        %s162 = scalar_select %p161, %s158, 3
        %s163 = smul.addr %s160, 4
        %s164 = sadd.s32 %s162, %s163
        %s165 = smul.addr %s164, 8
        %s166 = scalar_lea.vmem %s0, %s165
        %s167 = smul.u32 2, %s18
        %s168 = smul.u32 2, %s18
        %v170 = vld [vmem:[%s1] sm:$0xf]
        %v171 = vld [vmem:[%s1 + $0x4] sm:$0xf]
        %v172 = vld [vmem:[%s166] sm:$0xff]
        %v173 = vld [vmem:[%s166 + $0x8] sm:$0xff]
        %v174 = vpack.c.bf16 %v172, %v172
        %v175 = vpack.c.bf16 %v173, %v173
        %v176 = vunpack.c.l.bf16 %v174
        %v177 = vunpack.c.l.bf16 %v175
        %v178 = vsub.f32 %v172, %v176
        %v179 = vsub.f32 %v173, %v177
        %v180 = vpack.c.bf16 %v178, %v178
        %v181 = vpack.c.bf16 %v179, %v179
        %v182 = vunpack.c.l.bf16 %v180
        %v183 = vunpack.c.l.bf16 %v181
        %v184 = vsub.f32 %v178, %v182
        %v185 = vsub.f32 %v179, %v183
        %v186 = vpack.c.bf16 %v185, %v184
        %v189 = vunpack.c.l.b16 %v180
        %v190 = vunpack.c.l.b16 %v181
        %v191 = vpack.c.b16 %v190, %v189
        %v194 = vunpack.c.l.b16 %v170
        %v195 = vunpack.c.l.b16 %v171
        %v196 = vpack.c.b16 %v195, %v194
        %vm198 = vcmask 130048
        %v200 = vsel %vm198, %v191, 0
        %202 = vmatpush.bf16.msra.mxu0 0
        %203 = vmatpush.bf16.msra.mxu0 0
        %204 = vmatpush.bf16.msra.mxu0 0
        %205 = vmatpush.bf16.msra.mxu0 0
        %206 = vmatpush.bf16.msra.mxu0 0
        %207 = vmatpush.bf16.msra.mxu0 0
        %208 = vmatpush.bf16.msra.mxu0 0
        %209 = vmatpush.bf16.msra.mxu0 %v196
        %210 = vmatmul.bf16.gmra.mxu0 %v200
        %v211 = vpop.f32.mrf.mxu0
        %v212 = vadd.f32 0.0, %v211
        %v213 = vpop.f32.mrf.mxu0
        %v214 = vadd.f32 0.0, %v213
        %215 = vdwg.mxu0
        %v218 = vunpack.c.l.b16 %v174
        %v219 = vunpack.c.l.b16 %v175
        %v220 = vpack.c.b16 %v219, %v218
        %v222 = vsel %vm198, %v220, 0
        %224 = vmatpush.bf16.msra.mxu0 0
        %225 = vmatpush.bf16.msra.mxu0 0
        %226 = vmatpush.bf16.msra.mxu0 0
        %227 = vmatpush.bf16.msra.mxu0 0
        %228 = vmatpush.bf16.msra.mxu0 0
        %229 = vmatpush.bf16.msra.mxu0 0
        %230 = vmatpush.bf16.msra.mxu0 0
        %231 = vmatpush.bf16.msra.mxu0 %v196
        %232 = vmatmul.bf16.gmra.mxu0 %v222
        %v233 = vpop.f32.mrf.mxu0
        %v234 = vadd.f32 %v212, %v233
        %v235 = vpop.f32.mrf.mxu0
        %v236 = vadd.f32 %v214, %v235
        %237 = vdwg.mxu0
        %v239 = vsel %vm198, %v186, 0
        %241 = vmatpush.bf16.msra.mxu0 0
        %242 = vmatpush.bf16.msra.mxu0 0
        %243 = vmatpush.bf16.msra.mxu0 0
        %244 = vmatpush.bf16.msra.mxu0 0
        %245 = vmatpush.bf16.msra.mxu0 0
        %246 = vmatpush.bf16.msra.mxu0 0
        %247 = vmatpush.bf16.msra.mxu0 0
        %248 = vmatpush.bf16.msra.mxu0 %v196
        %249 = vmatmul.bf16.gmra.mxu0 %v239
        %v250 = vpop.f32.mrf.mxu0
        %v251 = vadd.f32 0.0, %v250
        %v252 = vpop.f32.mrf.mxu0
        %v253 = vadd.f32 0.0, %v252
        %254 = vdwg.mxu0
        %v255 = vadd.f32 %v234, %v251
        %v256 = vadd.f32 %v236, %v253
        %vm257 = vcmask 64512
        %258 = vst.msk [vmem:[%s157] sm:$0xff] %vm257, %v255
        %259 = vst.msk [vmem:[%s157 + $0x8] sm:$0xff] %vm257, %v256
        %262 = vrot.lane.b32.xlu0 %v255, 120
        %v263 = vpop.permute.xlu0 %262
        %264 = vrot.lane.b32.xlu0 %v256, 120
        %v265 = vpop.permute.xlu0 %264
        %s268 = scalar_lea.vmem %s157, 16 [#allocation2]
        %269 = vst.msk [vmem:[%s268] sm:$0xff] %vm257, %v263
        %270 = vst.msk [vmem:[%s268 + $0x8] sm:$0xff] %vm257, %v265
        %v271 = vld [vmem:[%s166] sm:$0xff]
        %v272 = vld [vmem:[%s166 + $0x8] sm:$0xff]
        %v273 = vpack.c.bf16 %v271, %v271
        %v274 = vpack.c.bf16 %v272, %v272
        %v275 = vunpack.c.l.bf16 %v273
        %v276 = vunpack.c.l.bf16 %v274
        %v277 = vsub.f32 %v271, %v275
        %v278 = vsub.f32 %v272, %v276
        %v279 = vpack.c.bf16 %v277, %v277
        %v280 = vpack.c.bf16 %v278, %v278
        %v281 = vunpack.c.l.bf16 %v279
        %v282 = vunpack.c.l.bf16 %v280
        %v283 = vsub.f32 %v277, %v281
        %v284 = vsub.f32 %v278, %v282
        %v285 = vpack.c.bf16 %v284, %v283
        %v288 = vunpack.c.l.b16 %v279
        %v289 = vunpack.c.l.b16 %v280
        %v290 = vpack.c.b16 %v289, %v288
        %291 = vrot.lane.b32.xlu0 %v290, 112
        %v292 = vpop.permute.xlu0 %291
        %v294 = vsel %vm198, %v292, 0
        %296 = vmatpush.bf16.msra.mxu0 0
        %297 = vmatpush.bf16.msra.mxu0 0
        %298 = vmatpush.bf16.msra.mxu0 0
        %299 = vmatpush.bf16.msra.mxu0 0
        %300 = vmatpush.bf16.msra.mxu0 0
        %301 = vmatpush.bf16.msra.mxu0 0
        %302 = vmatpush.bf16.msra.mxu0 0
        %303 = vmatpush.bf16.msra.mxu0 %v196
        %304 = vmatmul.bf16.gmra.mxu0 %v294
        %v305 = vpop.f32.mrf.mxu0
        %v306 = vadd.f32 0.0, %v305
        %v307 = vpop.f32.mrf.mxu0
        %v308 = vadd.f32 0.0, %v307
        %309 = vdwg.mxu0
        %v312 = vunpack.c.l.b16 %v273
        %v313 = vunpack.c.l.b16 %v274
        %v314 = vpack.c.b16 %v313, %v312
        %315 = vrot.lane.b32.xlu0 %v314, 112
        %v316 = vpop.permute.xlu0 %315
        %v318 = vsel %vm198, %v316, 0
        %320 = vmatpush.bf16.msra.mxu0 0
        %321 = vmatpush.bf16.msra.mxu0 0
        %322 = vmatpush.bf16.msra.mxu0 0
        %323 = vmatpush.bf16.msra.mxu0 0
        %324 = vmatpush.bf16.msra.mxu0 0
        %325 = vmatpush.bf16.msra.mxu0 0
        %326 = vmatpush.bf16.msra.mxu0 0
        %327 = vmatpush.bf16.msra.mxu0 %v196
        %328 = vmatmul.bf16.gmra.mxu0 %v318
        %v329 = vpop.f32.mrf.mxu0
        %v330 = vadd.f32 %v306, %v329
        %v331 = vpop.f32.mrf.mxu0
        %v332 = vadd.f32 %v308, %v331
        %333 = vdwg.mxu0
        %335 = vrot.lane.b32.xlu0 %v285, 112
        %v336 = vpop.permute.xlu0 %335
        %v338 = vsel %vm198, %v336, 0
        %340 = vmatpush.bf16.msra.mxu0 0
        %341 = vmatpush.bf16.msra.mxu0 0
        %342 = vmatpush.bf16.msra.mxu0 0
        %343 = vmatpush.bf16.msra.mxu0 0
        %344 = vmatpush.bf16.msra.mxu0 0
        %345 = vmatpush.bf16.msra.mxu0 0
        %346 = vmatpush.bf16.msra.mxu0 0
        %347 = vmatpush.bf16.msra.mxu0 %v196
        %348 = vmatmul.bf16.gmra.mxu0 %v338
        %v349 = vpop.f32.mrf.mxu0
        %v350 = vadd.f32 0.0, %v349
        %v351 = vpop.f32.mrf.mxu0
        %v352 = vadd.f32 0.0, %v351
        %353 = vdwg.mxu0
        %v354 = vadd.f32 %v330, %v350
        %v355 = vadd.f32 %v332, %v352
        %s356 = scalar_lea.vmem %s157, 32 [#allocation2]
        %357 = vst.msk [vmem:[%s356] sm:$0xff] %vm257, %v354
        %358 = vst.msk [vmem:[%s356 + $0x8] sm:$0xff] %vm257, %v355
        %361 = vrot.lane.b32.xlu0 %v354, 120
        %v362 = vpop.permute.xlu0 %361
        %363 = vrot.lane.b32.xlu0 %v355, 120
        %v364 = vpop.permute.xlu0 %363
        %s367 = scalar_lea.vmem %s157, 48 [#allocation2]
        %368 = vst.msk [vmem:[%s367] sm:$0xff] %vm257, %v362
        %369 = vst.msk [vmem:[%s367 + $0x8] sm:$0xff] %vm257, %v364
        %s370 = sand.u32 %s84, 1
        %s371 = sand.u32 %s84, 1
        %s372 = smul.addr %s371, 64
        %s373 = scalar_lea.vmem [#allocation2], %s372
        // Predicated region
        $region29: #{reorg_forward.1} parent=27 // pred_check
          %p374 = pneg %p94
        $region30: #{reorg_forward.1} parent=27 // pred_check_branch
          %376 = sbr.rel (%p374) target = $region32
        $region31: #{reorg_forward.1} parent=27 // pred_region
          %s377 = smul.u32 2, %s18
          %s378 = smul.addr %s17, 16
          %s379 = sadd.s32 %s377, %s378
          %s380 = smul.addr %s379, 8
          %s381 = scalar_lea.vmem %s2, %s380
          // Predicated region
          $region33: #{reorg_forward.1} parent=31 // pred_check
            _
          $region34: #{reorg_forward.1} parent=31 // pred_check_branch
            %383 = sbr.rel (0) target = $region36
          $region35: #{reorg_forward.1} parent=31 // pred_region
            // Predicated region
            $region37: #{reorg_forward.1} parent=35 // pred_check
              _
            $region38: #{reorg_forward.1} parent=35 // pred_check_branch
              %385 = sbr.rel (0) target = $region40
            $region39: #{reorg_forward.1} parent=35 // pred_region
              // Predicated region
              $region52: #{reorg_forward.1} parent=39 // pred_check
                _
              $region53: #{reorg_forward.1} parent=39 // pred_check_branch
                %415 = sbr.rel (0) target = $region55
              $region54: #{reorg_forward.1} parent=39 // pred_region
                loop: start=0, step=1, limit=1
                $region56: #{reorg_forward.1} parent=54 // loop_pre_header
                  _
                $region57: #{reorg_forward.1} parent=54 // loop_header
                  %s417 = sphi 0, %s421
                  %p418 = scmp.ge.s32.totalorder %s417, 1
                  %s422 = sphi %s373, %s373
                  %s423 = sphi %s381, %s381
                $region58: #{reorg_forward.1} parent=54 // loop_header_branch
                  %420 = sbr.rel (%p418) target = $region62
                $region59: #{reorg_forward.1} parent=54 // loop_body
                  %v424 = vld [vmem:[%s422] sm:$0xff]
                  %425 = vst [vmem:[%s423] sm:$0xff] %v424
                  %v426 = vld [vmem:[%s422 + $0x8] sm:$0xff]
                  %427 = vst [vmem:[%s423 + $0x8] sm:$0xff] %v426
                  %v428 = vld [vmem:[%s422 + $0x10] sm:$0xff]
                  %429 = vst [vmem:[%s423 + $0x20] sm:$0xff] %v428
                  %v430 = vld [vmem:[%s422 + $0x18] sm:$0xff]
                  %431 = vst [vmem:[%s423 + $0x28] sm:$0xff] %v430
                  %v432 = vld [vmem:[%s422 + $0x20] sm:$0xff]
                  %433 = vst [vmem:[%s423 + $0x40] sm:$0xff] %v432
                  %v434 = vld [vmem:[%s422 + $0x28] sm:$0xff]
                  %435 = vst [vmem:[%s423 + $0x48] sm:$0xff] %v434
                  %v436 = vld [vmem:[%s422 + $0x30] sm:$0xff]
                  %437 = vst [vmem:[%s423 + $0x60] sm:$0xff] %v436
                  %v438 = vld [vmem:[%s422 + $0x38] sm:$0xff]
                  %439 = vst [vmem:[%s423 + $0x68] sm:$0xff] %v438
                $region60: #{reorg_forward.1} parent=54 // loop_footer
                  %s421 = sadd.s32 1, %s417
                $region61: #{reorg_forward.1} parent=54 // loop_footer_branch
                  %416 = sbr.rel target = $region57
                $region62: #{reorg_forward.1} parent=54 // loop_exit
                  _
              $region55: #{reorg_forward.1} parent=39 // pred_fallthru
                _
              // Predicated region
              $region63: #{reorg_forward.1} parent=39 // pred_check
                _
              $region64: #{reorg_forward.1} parent=39 // pred_check_branch
                %441 = sbr.rel target = $region66
              $region65: #{reorg_forward.1} parent=39 // pred_region
                _
              $region66: #{reorg_forward.1} parent=39 // pred_fallthru
                _
            $region40: #{reorg_forward.1} parent=35 // pred_fallthru
              _
            // Predicated region
            $region41: #{reorg_forward.1} parent=35 // pred_check
              _
            $region42: #{reorg_forward.1} parent=35 // pred_check_branch
              %387 = sbr.rel target = $region44
            $region43: #{reorg_forward.1} parent=35 // pred_region
              %s389 = ssub.s32 256, 1
              loop: start=0, step=1, limit=1
              $region45: #{reorg_forward.1} parent=43 // loop_pre_header
                _
              $region46: #{reorg_forward.1} parent=43 // loop_header
                %s391 = sphi 0, %s395
                %p392 = scmp.ge.s32.totalorder %s391, 1
                %s396 = sphi %s373, %s373
                %s397 = sphi %s381, %s381
              $region47: #{reorg_forward.1} parent=43 // loop_header_branch
                %394 = sbr.rel (%p392) target = $region51
              $region48: #{reorg_forward.1} parent=43 // loop_body
                %v398 = vld [vmem:[%s396] sm:%s389]
                %399 = vst [vmem:[%s397] sm:%s389] %v398
                %v400 = vld [vmem:[%s396 + $0x8] sm:%s389]
                %401 = vst [vmem:[%s397 + $0x8] sm:%s389] %v400
                %v402 = vld [vmem:[%s396 + $0x10] sm:%s389]
                %403 = vst [vmem:[%s397 + $0x20] sm:%s389] %v402
                %v404 = vld [vmem:[%s396 + $0x18] sm:%s389]
                %405 = vst [vmem:[%s397 + $0x28] sm:%s389] %v404
                %v406 = vld [vmem:[%s396 + $0x20] sm:%s389]
                %407 = vst [vmem:[%s397 + $0x40] sm:%s389] %v406
                %v408 = vld [vmem:[%s396 + $0x28] sm:%s389]
                %409 = vst [vmem:[%s397 + $0x48] sm:%s389] %v408
                %v410 = vld [vmem:[%s396 + $0x30] sm:%s389]
                %411 = vst [vmem:[%s397 + $0x60] sm:%s389] %v410
                %v412 = vld [vmem:[%s396 + $0x38] sm:%s389]
                %413 = vst [vmem:[%s397 + $0x68] sm:%s389] %v412
              $region49: #{reorg_forward.1} parent=43 // loop_footer
                %s395 = sadd.s32 1, %s391
              $region50: #{reorg_forward.1} parent=43 // loop_footer_branch
                %390 = sbr.rel target = $region46
              $region51: #{reorg_forward.1} parent=43 // loop_exit
                _
            $region44: #{reorg_forward.1} parent=35 // pred_fallthru
              _
          $region36: #{reorg_forward.1} parent=31 // pred_fallthru
            _
          %442 = vnop
        $region32: #{reorg_forward.1} parent=27 // pred_fallthru
          _
      $region28: #{reorg_forward.1} parent=5 // pred_fallthru
        _
      %p443 = scmp.le.s32.totalorder 2, %s8
      // Predicated region
      $region67: #{reorg_forward.1} parent=5 // pred_check
        %p444 = pneg %p443
      $region68: #{reorg_forward.1} parent=5 // pred_check_branch
        %446 = sbr.rel (%p444) target = $region70
      $region69: #{reorg_forward.1} parent=5 // pred_region
        %s447 = ssub.s32 %s8, 2
        // Predicated region
        $region71: #{reorg_forward.1} parent=69 // pred_check
          %p448 = pneg %p100
        $region72: #{reorg_forward.1} parent=69 // pred_check_branch
          %450 = sbr.rel (%p448) target = $region74
        $region73: #{reorg_forward.1} parent=69 // pred_region
          %s451 = sand.u32 %s85, 1
          %s452 = sand.u32 %s85, 1
          %s453 = smul.addr %s452, 64
          %s454 = scalar_lea.vmem [#allocation2], %s453
        $region74: #{reorg_forward.1} parent=69 // pred_fallthru
          _
      $region70: #{reorg_forward.1} parent=5 // pred_fallthru
        _
    $region6: #{reorg_forward.1} parent=1 // loop_footer
      %s12 = sadd.s32 1, %s8
    $region7: #{reorg_forward.1} parent=1 // loop_footer_branch
      %7 = sbr.rel target = $region3
    $region8: #{reorg_forward.1} parent=1 // loop_exit
      _

</llo_original>
